<compile_context>
chip_gen: v5e
topology: v5e:2x2
jax: 0.10.0
libtpu: 0.0.40
codegen_flags: <defaults>
</compile_context>

<pallas_src>
import jax
import jax.numpy as jnp
from jax.experimental import pallas as pl
from jax.experimental.pallas import tpu as pltpu


def _attentive_gru1_kernel(
    logit_c_ref, logit_r_ref, efeat_aug_ref, nfeat_ref, dst_c_ref, dst_r_ref,
    we_ref, be_ref, wi_ref, bi_ref, wh_ref, bh_ref,
    out_ref,
):
    E = logit_c_ref.shape[0]
    N, Hn = nfeat_ref.shape
    Fe = we_ref.shape[0]                  # efeat_aug has Fe feature cols + 1 ones col

    logits_c = logit_c_ref[...]           # [E, 1] f32
    logits_r = logit_r_ref[...]           # [1, E] f32 (row view, no in-kernel transpose)
    efeat_aug = efeat_aug_ref[...]        # [E, Fe+1] bf16 ([edge_feats | 1])
    h = nfeat_ref[...]                    # [N, Hn] f32
    dst_c = dst_c_ref[...]                # [E, 1] i32
    dst_r = dst_r_ref[...]                # [1, E] i32

    # --- one-hot dst assignment, edge-major and node-major views (exact in bf16) ---
    eh = (dst_c == jax.lax.broadcasted_iota(jnp.int32, (E, N), 1)).astype(jnp.bfloat16)
    ne_b = jax.lax.broadcasted_iota(jnp.int32, (N, E), 0) == dst_r               # [N, E] bool
    ne = ne_b.astype(jnp.bfloat16)

    # --- per-dst softmax numerator (max-stabilized) ---
    NEG = jnp.float32(-1e30)
    seg_max = jnp.max(jnp.where(ne_b, logits_r, NEG), axis=1, keepdims=True)     # [N, 1] f32
    max_e = jnp.dot(eh, seg_max.astype(jnp.bfloat16),
                    preferred_element_type=jnp.float32)                          # [E, 1]
    a = jnp.exp(logits_c - max_e)                                                # [E, 1] f32

    # --- fused segment-sum + weighted edge-feature aggregation (single matmul) ---
    # payload = [a*efeat | a]  ->  ne @ payload = [sum_e a*efeat | seg_sum]
    payload = (a * efeat_aug).astype(jnp.bfloat16)                               # [E, Fe+1]
    agg = jnp.dot(ne, payload, preferred_element_type=jnp.float32)               # [N, Fe+1]
    feat_agg = agg[:, :Fe]                                                       # [N, Fe]
    seg_sum = agg[:, Fe:Fe + 1]                                                  # [N, 1]

    # Normalize after aggregation; zero in-degree nodes get c = 0 exactly.
    inv = jnp.where(seg_sum > 0, pl.reciprocal(seg_sum, approx=True), 0.0)       # [N, 1]

    # --- edge Linear pushed to node granularity ---
    #   c[v] = (sum_e alpha*efeat) @ We + (sum_e alpha) * be
    # TODO(synk): nn.Dropout has no Pallas equivalent matching torch's RNG mask;
    # treated as identity (eval / deterministic mode).
    c = (jnp.dot((feat_agg * inv).astype(jnp.bfloat16), we_ref[...],
                 preferred_element_type=jnp.float32)
         + (seg_sum * inv) * be_ref[...])                                        # [N, He]

    # --- context = elu(c) ---
    # TODO(synk): expm1 would be preferable near 0 but exp-1 is the guaranteed lowering.
    context = jnp.where(c > 0, c, jnp.exp(c) - 1.0)

    # --- GRUCell(context, node_feats): two fused gate matmuls ---
    gi = jnp.dot(context.astype(jnp.bfloat16), wi_ref[...],
                 preferred_element_type=jnp.float32) + bi_ref[...]               # [N, 3Hn]
    gh = jnp.dot(h.astype(jnp.bfloat16), wh_ref[...],
                 preferred_element_type=jnp.float32) + bh_ref[...]               # [N, 3Hn]

    def sig(x):  # EUP tanh instead of a VPU divide
        return 0.5 * jnp.tanh(0.5 * x) + 0.5

    r = sig(gi[:, :Hn] + gh[:, :Hn])
    z = sig(gi[:, Hn:2 * Hn] + gh[:, Hn:2 * Hn])
    n = jnp.tanh(gi[:, 2 * Hn:] + r * gh[:, 2 * Hn:])
    h_new = (1.0 - z) * n + z * h

    # --- F.relu ---
    out_ref[...] = jnp.maximum(h_new, 0.0).astype(out_ref.dtype)


def attentive_gru1(edge_logits, edge_feats, node_feats, dst, params):
    """edge_logits: [E, 1] f32, edge_feats: [E, Fe] f32, node_feats: [N, Hn] f32,
    dst: [E] int32 (destination node per edge).  Returns [N, Hn] f32."""
    E, Fe = edge_feats.shape
    N, Hn = node_feats.shape

    # Row/column views of per-edge scalars (avoids any in-kernel transpose).
    logits_c = edge_logits.reshape(E, 1).astype(jnp.float32)
    logits_r = edge_logits.reshape(1, E).astype(jnp.float32)
    dst_c = dst.reshape(E, 1).astype(jnp.int32)
    dst_r = dst.reshape(1, E).astype(jnp.int32)

    # Append a ones column so segment-sum and feature aggregation share one matmul.
    efeat_aug = jnp.concatenate(
        [edge_feats.astype(jnp.float32), jnp.ones((E, 1), jnp.float32)], axis=1
    ).astype(jnp.bfloat16)                                                       # [E, Fe+1]

    # bf16 MXU operands (f32 accumulation happens in-kernel).
    we = params["w_e"].astype(jnp.bfloat16)                                      # [Fe, He]
    be = params["b_e"].astype(jnp.float32)                                       # [1, He]

    # Fuse the six GRU gate matmuls into two (weights [.,3Hn], biases [1,3Hn]).
    wi = jnp.concatenate([params["w_ir"], params["w_iz"], params["w_in"]],
                         axis=1).astype(jnp.bfloat16)                            # [He, 3Hn]
    wh = jnp.concatenate([params["w_hr"], params["w_hz"], params["w_hn"]],
                         axis=1).astype(jnp.bfloat16)                            # [Hn, 3Hn]
    bi = jnp.concatenate([params["b_ir"], params["b_iz"], params["b_in"]],
                         axis=1).astype(jnp.float32)                             # [1, 3Hn]
    bh = jnp.concatenate([params["b_hr"], params["b_hz"], params["b_hn"]],
                         axis=1).astype(jnp.float32)                             # [1, 3Hn]

    vmem = pl.BlockSpec(memory_space=pltpu.MemorySpace.VMEM)
    out = pl.pallas_call(
        _attentive_gru1_kernel,
        out_shape=jax.ShapeDtypeStruct((N, Hn), jnp.float32),
        in_specs=[vmem] * 12,
        out_specs=vmem,
    )(logits_c, logits_r, efeat_aug, node_feats.astype(jnp.float32),
      dst_c, dst_r, we, be, wi, bi, wh, bh)
    return out


if __name__ == "__main__":
    key = jax.random.PRNGKey(0)
    node_feat_size = 32
    edge_feat_size = 8
    edge_hidden_size = 32
    N, E = 16, 64

    keys = jax.random.split(key, 18)
    edge_logits = jax.random.normal(keys[0], (E, 1), jnp.float32)
    edge_feats = jax.random.normal(keys[1], (E, edge_feat_size), jnp.float32)
    node_feats = jax.random.normal(keys[2], (N, node_feat_size), jnp.float32)
    dst = jax.random.randint(keys[3], (E,), 0, N, dtype=jnp.int32)

    def lin(k, fan_in, shape):
        return jax.random.uniform(k, shape, jnp.float32, -1.0, 1.0) / jnp.sqrt(fan_in)

    # Shapes follow nn.Linear(edge_feat_size, edge_hidden_size) and
    # nn.GRUCell(edge_hidden_size, node_feat_size); weights stored [in, out] so the
    # in-kernel matmuls run as [rows, in] @ [in, out].
    params = dict(
        w_e=lin(keys[4], edge_feat_size, (edge_feat_size, edge_hidden_size)),
        b_e=lin(keys[5], edge_feat_size, (1, edge_hidden_size)),
        w_ir=lin(keys[6], edge_hidden_size, (edge_hidden_size, node_feat_size)),
        w_iz=lin(keys[7], edge_hidden_size, (edge_hidden_size, node_feat_size)),
        w_in=lin(keys[8], edge_hidden_size, (edge_hidden_size, node_feat_size)),
        w_hr=lin(keys[9], node_feat_size, (node_feat_size, node_feat_size)),
        w_hz=lin(keys[10], node_feat_size, (node_feat_size, node_feat_size)),
        w_hn=lin(keys[11], node_feat_size, (node_feat_size, node_feat_size)),
        b_ir=lin(keys[12], node_feat_size, (1, node_feat_size)),
        b_iz=lin(keys[13], node_feat_size, (1, node_feat_size)),
        b_in=lin(keys[14], node_feat_size, (1, node_feat_size)),
        b_hr=lin(keys[15], node_feat_size, (1, node_feat_size)),
        b_hz=lin(keys[16], node_feat_size, (1, node_feat_size)),
        b_hn=lin(keys[17], node_feat_size, (1, node_feat_size)),
    )

    out = attentive_gru1(edge_logits, edge_feats, node_feats, dst, params)
    jax.block_until_ready(out)
    assert out.shape == (N, node_feat_size) and out.dtype == jnp.float32
    assert bool(jnp.all(jnp.isfinite(out)))
    print("KERNEL_OK")
</pallas_src>

<mosaic_0001>
module attributes {stable_mosaic.version = 11 : i64} {
  func.func @_attentive_gru1_kernel(%arg0: memref<64x1xf32, #tpu.memory_space<vmem>>, %arg1: memref<1x64xf32, #tpu.memory_space<vmem>>, %arg2: memref<64x9xbf16, #tpu.memory_space<vmem>>, %arg3: memref<16x32xf32, #tpu.memory_space<vmem>>, %arg4: memref<64x1xi32, #tpu.memory_space<vmem>>, %arg5: memref<1x64xi32, #tpu.memory_space<vmem>>, %arg6: memref<8x32xbf16, #tpu.memory_space<vmem>>, %arg7: memref<1x32xf32, #tpu.memory_space<vmem>>, %arg8: memref<32x96xbf16, #tpu.memory_space<vmem>>, %arg9: memref<1x96xf32, #tpu.memory_space<vmem>>, %arg10: memref<32x96xbf16, #tpu.memory_space<vmem>>, %arg11: memref<1x96xf32, #tpu.memory_space<vmem>>, %arg12: memref<16x32xf32, #tpu.memory_space<vmem>>) attributes {dimension_semantics = [], scalar_prefetch = 0 : i64, scratch_operands = 0 : i64, tpu.core_type = #tpu.core_type<tc>} {
    %c0 = arith.constant 0 : index
    %c0_0 = arith.constant 0 : index
    %0 = vector.load %arg0[%c0, %c0_0] : memref<64x1xf32, #tpu.memory_space<vmem>>, vector<64x1xf32>
    %c0_1 = arith.constant 0 : index
    %c0_2 = arith.constant 0 : index
    %1 = vector.load %arg1[%c0_1, %c0_2] : memref<1x64xf32, #tpu.memory_space<vmem>>, vector<1x64xf32>
    %c0_3 = arith.constant 0 : index
    %c0_4 = arith.constant 0 : index
    %2 = vector.load %arg2[%c0_3, %c0_4] : memref<64x9xbf16, #tpu.memory_space<vmem>>, vector<64x9xbf16>
    %c0_5 = arith.constant 0 : index
    %c0_6 = arith.constant 0 : index
    %3 = vector.load %arg3[%c0_5, %c0_6] : memref<16x32xf32, #tpu.memory_space<vmem>>, vector<16x32xf32>
    %c0_7 = arith.constant 0 : index
    %c0_8 = arith.constant 0 : index
    %4 = vector.load %arg4[%c0_7, %c0_8] : memref<64x1xi32, #tpu.memory_space<vmem>>, vector<64x1xi32>
    %c0_9 = arith.constant 0 : index
    %c0_10 = arith.constant 0 : index
    %5 = vector.load %arg5[%c0_9, %c0_10] : memref<1x64xi32, #tpu.memory_space<vmem>>, vector<1x64xi32>
    %6 = tpu.iota {dimensions = array<i32: 1>} : vector<64x16xi32>
    %7 = vector.broadcast %4 : vector<64x1xi32> to vector<64x16xi32>
    %8 = arith.cmpi eq, %7, %6 : vector<64x16xi32>
    %9 = arith.extui %8 : vector<64x16xi1> to vector<64x16xi32>
    %10 = arith.sitofp %9 : vector<64x16xi32> to vector<64x16xf32>
    %11 = arith.truncf %10 : vector<64x16xf32> to vector<64x16xbf16>
    %12 = tpu.iota {dimensions = array<i32: 0>} : vector<16x64xi32>
    %13 = vector.broadcast %5 : vector<1x64xi32> to vector<16x64xi32>
    %14 = arith.cmpi eq, %12, %13 : vector<16x64xi32>
    %15 = arith.extui %14 : vector<16x64xi1> to vector<16x64xi32>
    %16 = arith.sitofp %15 : vector<16x64xi32> to vector<16x64xf32>
    %17 = arith.truncf %16 : vector<16x64xf32> to vector<16x64xbf16>
    %cst = arith.constant -1.000000e+30 : f32
    %18 = vector.shape_cast %1 : vector<1x64xf32> to vector<1x64xf32>
    %19 = vector.broadcast %18 : vector<1x64xf32> to vector<16x64xf32>
    %20 = vector.broadcast %cst : f32 to vector<16x64xf32>
    %21 = arith.select %14, %19, %20 : vector<16x64xi1>, vector<16x64xf32>
    %cst_11 = arith.constant dense<0xFF800000> : vector<16xf32>
    %22 = vector.multi_reduction <maximumf>, %21, %cst_11 [1] : vector<16x64xf32> to vector<16xf32>
    %23 = vector.shape_cast %22 : vector<16xf32> to vector<16x1xf32>
    %24 = arith.truncf %23 : vector<16x1xf32> to vector<16x1xbf16>
    %cst_12 = arith.constant dense<0.000000e+00> : vector<64x1xf32>
    %25 = tpu.matmul %11, %24, %cst_12 {dimension_numbers = #tpu.dot_dimension_numbers<[1], [0], [0], [1], [0, 0, 1, 1], [], []>} : vector<64x16xbf16>, vector<16x1xbf16>, vector<64x1xf32> -> vector<64x1xf32>
    %26 = arith.subf %0, %25 : vector<64x1xf32>
    %27 = math.exp %26 : vector<64x1xf32>
    %28 = arith.extf %2 : vector<64x9xbf16> to vector<64x9xf32>
    %29 = vector.broadcast %27 : vector<64x1xf32> to vector<64x9xf32>
    %30 = arith.mulf %29, %28 : vector<64x9xf32>
    %31 = arith.truncf %30 : vector<64x9xf32> to vector<64x9xbf16>
    %cst_13 = arith.constant dense<0.000000e+00> : vector<16x9xf32>
    %32 = tpu.matmul %17, %31, %cst_13 {dimension_numbers = #tpu.dot_dimension_numbers<[1], [0], [0], [1], [0, 0, 1, 1], [], []>} : vector<16x64xbf16>, vector<64x9xbf16>, vector<16x9xf32> -> vector<16x9xf32>
    %33 = vector.extract_strided_slice %32 {offsets = [0, 0], sizes = [16, 8], strides = [1, 1]} : vector<16x9xf32> to vector<16x8xf32>
    %34 = vector.extract_strided_slice %32 {offsets = [0, 8], sizes = [16, 1], strides = [1, 1]} : vector<16x9xf32> to vector<16x1xf32>
    %cst_14 = arith.constant 0.000000e+00 : f32
    %35 = vector.broadcast %cst_14 : f32 to vector<16x1xf32>
    %36 = arith.cmpf ogt, %34, %35 : vector<16x1xf32>
    %37 = tpu.reciprocal %34 {approx = true} : vector<16x1xf32> -> vector<16x1xf32>
    %cst_15 = arith.constant 0.000000e+00 : f32
    %38 = vector.broadcast %cst_15 : f32 to vector<16x1xf32>
    %39 = arith.select %36, %37, %38 : vector<16x1xi1>, vector<16x1xf32>
    %40 = vector.broadcast %39 : vector<16x1xf32> to vector<16x8xf32>
    %41 = arith.mulf %33, %40 : vector<16x8xf32>
    %42 = arith.truncf %41 : vector<16x8xf32> to vector<16x8xbf16>
    %c0_16 = arith.constant 0 : index
    %c0_17 = arith.constant 0 : index
    %43 = vector.load %arg6[%c0_16, %c0_17] : memref<8x32xbf16, #tpu.memory_space<vmem>>, vector<8x32xbf16>
    %cst_18 = arith.constant dense<0.000000e+00> : vector<16x32xf32>
    %44 = tpu.matmul %42, %43, %cst_18 {dimension_numbers = #tpu.dot_dimension_numbers<[1], [0], [0], [1], [0, 0, 1, 1], [], []>} : vector<16x8xbf16>, vector<8x32xbf16>, vector<16x32xf32> -> vector<16x32xf32>
    %45 = arith.mulf %34, %39 : vector<16x1xf32>
    %c0_19 = arith.constant 0 : index
    %c0_20 = arith.constant 0 : index
    %46 = vector.load %arg7[%c0_19, %c0_20] : memref<1x32xf32, #tpu.memory_space<vmem>>, vector<1x32xf32>
    %47 = vector.broadcast %45 : vector<16x1xf32> to vector<16x32xf32>
    %48 = vector.broadcast %46 : vector<1x32xf32> to vector<16x32xf32>
    %49 = arith.mulf %47, %48 : vector<16x32xf32>
    %50 = arith.addf %44, %49 : vector<16x32xf32>
    %cst_21 = arith.constant 0.000000e+00 : f32
    %51 = vector.broadcast %cst_21 : f32 to vector<16x32xf32>
    %52 = arith.cmpf ogt, %50, %51 : vector<16x32xf32>
    %53 = math.exp %50 : vector<16x32xf32>
    %cst_22 = arith.constant 1.000000e+00 : f32
    %54 = vector.broadcast %cst_22 : f32 to vector<16x32xf32>
    %55 = arith.subf %53, %54 : vector<16x32xf32>
    %56 = arith.select %52, %50, %55 : vector<16x32xi1>, vector<16x32xf32>
    %57 = arith.truncf %56 : vector<16x32xf32> to vector<16x32xbf16>
    %c0_23 = arith.constant 0 : index
    %c0_24 = arith.constant 0 : index
    %58 = vector.load %arg8[%c0_23, %c0_24] : memref<32x96xbf16, #tpu.memory_space<vmem>>, vector<32x96xbf16>
    %cst_25 = arith.constant dense<0.000000e+00> : vector<16x96xf32>
    %59 = tpu.matmul %57, %58, %cst_25 {dimension_numbers = #tpu.dot_dimension_numbers<[1], [0], [0], [1], [0, 0, 1, 1], [], []>} : vector<16x32xbf16>, vector<32x96xbf16>, vector<16x96xf32> -> vector<16x96xf32>
    %c0_26 = arith.constant 0 : index
    %c0_27 = arith.constant 0 : index
    %60 = vector.load %arg9[%c0_26, %c0_27] : memref<1x96xf32, #tpu.memory_space<vmem>>, vector<1x96xf32>
    %61 = vector.broadcast %60 : vector<1x96xf32> to vector<16x96xf32>
    %62 = arith.addf %59, %61 : vector<16x96xf32>
    %63 = arith.truncf %3 : vector<16x32xf32> to vector<16x32xbf16>
    %c0_28 = arith.constant 0 : index
    %c0_29 = arith.constant 0 : index
    %64 = vector.load %arg10[%c0_28, %c0_29] : memref<32x96xbf16, #tpu.memory_space<vmem>>, vector<32x96xbf16>
    %cst_30 = arith.constant dense<0.000000e+00> : vector<16x96xf32>
    %65 = tpu.matmul %63, %64, %cst_30 {dimension_numbers = #tpu.dot_dimension_numbers<[1], [0], [0], [1], [0, 0, 1, 1], [], []>} : vector<16x32xbf16>, vector<32x96xbf16>, vector<16x96xf32> -> vector<16x96xf32>
    %c0_31 = arith.constant 0 : index
    %c0_32 = arith.constant 0 : index
    %66 = vector.load %arg11[%c0_31, %c0_32] : memref<1x96xf32, #tpu.memory_space<vmem>>, vector<1x96xf32>
    %67 = vector.broadcast %66 : vector<1x96xf32> to vector<16x96xf32>
    %68 = arith.addf %65, %67 : vector<16x96xf32>
    %69 = vector.extract_strided_slice %62 {offsets = [0, 0], sizes = [16, 32], strides = [1, 1]} : vector<16x96xf32> to vector<16x32xf32>
    %70 = vector.extract_strided_slice %68 {offsets = [0, 0], sizes = [16, 32], strides = [1, 1]} : vector<16x96xf32> to vector<16x32xf32>
    %71 = arith.addf %69, %70 : vector<16x32xf32>
    %cst_33 = arith.constant 5.000000e-01 : f32
    %72 = vector.broadcast %cst_33 : f32 to vector<16x32xf32>
    %73 = arith.mulf %72, %71 : vector<16x32xf32>
    %74 = math.tanh %73 : vector<16x32xf32>
    %cst_34 = arith.constant 5.000000e-01 : f32
    %75 = vector.broadcast %cst_34 : f32 to vector<16x32xf32>
    %76 = arith.mulf %75, %74 : vector<16x32xf32>
    %cst_35 = arith.constant 5.000000e-01 : f32
    %77 = vector.broadcast %cst_35 : f32 to vector<16x32xf32>
    %78 = arith.addf %76, %77 : vector<16x32xf32>
    %79 = vector.extract_strided_slice %62 {offsets = [0, 32], sizes = [16, 32], strides = [1, 1]} : vector<16x96xf32> to vector<16x32xf32>
    %80 = vector.extract_strided_slice %68 {offsets = [0, 32], sizes = [16, 32], strides = [1, 1]} : vector<16x96xf32> to vector<16x32xf32>
    %81 = arith.addf %79, %80 : vector<16x32xf32>
    %cst_36 = arith.constant 5.000000e-01 : f32
    %82 = vector.broadcast %cst_36 : f32 to vector<16x32xf32>
    %83 = arith.mulf %82, %81 : vector<16x32xf32>
    %84 = math.tanh %83 : vector<16x32xf32>
    %cst_37 = arith.constant 5.000000e-01 : f32
    %85 = vector.broadcast %cst_37 : f32 to vector<16x32xf32>
    %86 = arith.mulf %85, %84 : vector<16x32xf32>
    %cst_38 = arith.constant 5.000000e-01 : f32
    %87 = vector.broadcast %cst_38 : f32 to vector<16x32xf32>
    %88 = arith.addf %86, %87 : vector<16x32xf32>
    %89 = vector.extract_strided_slice %62 {offsets = [0, 64], sizes = [16, 32], strides = [1, 1]} : vector<16x96xf32> to vector<16x32xf32>
    %90 = vector.extract_strided_slice %68 {offsets = [0, 64], sizes = [16, 32], strides = [1, 1]} : vector<16x96xf32> to vector<16x32xf32>
    %91 = arith.mulf %78, %90 : vector<16x32xf32>
    %92 = arith.addf %89, %91 : vector<16x32xf32>
    %93 = math.tanh %92 : vector<16x32xf32>
    %cst_39 = arith.constant 1.000000e+00 : f32
    %94 = vector.broadcast %cst_39 : f32 to vector<16x32xf32>
    %95 = arith.subf %94, %88 : vector<16x32xf32>
    %96 = arith.mulf %95, %93 : vector<16x32xf32>
    %97 = arith.mulf %88, %3 : vector<16x32xf32>
    %98 = arith.addf %96, %97 : vector<16x32xf32>
    %cst_40 = arith.constant 0.000000e+00 : f32
    %99 = vector.broadcast %cst_40 : f32 to vector<16x32xf32>
    %100 = arith.maximumf %98, %99 : vector<16x32xf32>
    %c0_41 = arith.constant 0 : index
    %c0_42 = arith.constant 0 : index
    %101 = vector.load %arg12[%c0_41, %c0_42] : memref<16x32xf32, #tpu.memory_space<vmem>>, vector<16x32xf32>
    tpu.vector_store %arg12[%c0_41, %c0_42], %100 {strides = array<i32>} : memref<16x32xf32, #tpu.memory_space<vmem>>, vector<16x32xf32>,
    return
  }
}

</mosaic_0001>

<llo_original>
// kernel: tpu_custom_call.1
$region0: #{tpu_custom_call.1}
  #allocation0 [shape = 'u32[]', space=smem, size = 0x4, offset = 0x4, fixed_abs, tag = 'smem constant byte address 0x4 - core index']
  #allocation1 [shape = 'u32[72,128]{1,0:T(1,128)}', space=vmem, size = 0x9000, scoped, tag = 'internal scratch']
  %s0 = inlined_call_operand.vmem [shape: f32[64,1], index: 0, kind: input, shape index: {}]
  %s1 = inlined_call_operand.vmem [shape: f32[1,64], index: 1, kind: input, shape index: {}]
  %s2 = inlined_call_operand.vmem [shape: bf16[64,9], index: 2, kind: input, shape index: {}]
  %s3 = inlined_call_operand.vmem [shape: f32[16,32], index: 3, kind: input, shape index: {}]
  %s4 = inlined_call_operand.vmem [shape: s32[64,1], index: 4, kind: input, shape index: {}]
  %s5 = inlined_call_operand.vmem [shape: s32[1,64], index: 5, kind: input, shape index: {}]
  %s6 = inlined_call_operand.vmem [shape: bf16[8,32], index: 6, kind: input, shape index: {}]
  %s7 = inlined_call_operand.vmem [shape: f32[1,32], index: 7, kind: input, shape index: {}]
  %s8 = inlined_call_operand.vmem [shape: bf16[32,96], index: 8, kind: input, shape index: {}]
  %s9 = inlined_call_operand.vmem [shape: f32[1,96], index: 9, kind: input, shape index: {}]
  %s10 = inlined_call_operand.vmem [shape: bf16[32,96], index: 10, kind: input, shape index: {}]
  %s11 = inlined_call_operand.vmem [shape: f32[1,96], index: 11, kind: input, shape index: {}]
  %s12 = inlined_call_operand.hbm [shape: f32[16,32], index: 12, kind: output, shape index: {}]
  %s13 = sld [smem:[#allocation0]]
  $region58: #{tpu_custom_call.1} parent=0
    _
  %s15 = ssub.s32 1, %s13
  %s16 = scalar_select 0, %s15, %s13
  $region1: #{tpu_custom_call.1} parent=0
    #allocation2 [shape = 'u8[8192]{0}', space=vmem, size = 0x2000, scoped, tag = 'output window, operand 0, single buffered']
    #allocation3 [shape = 's32[1]{0}', space=sflag, size = 0x4, scoped, tag = 'scoped memory for tpu_custom_call.1']
    %17 = vsyncpa [#allocation3], 0
    // Predicated region
    $region2: #{tpu_custom_call.1} parent=1 // pred_check
      _
    $region3: #{tpu_custom_call.1} parent=1 // pred_check_branch
      %19 = sbr.rel (0) target = $region5
    $region4: #{tpu_custom_call.1} parent=1 // pred_region
      _
    $region5: #{tpu_custom_call.1} parent=1 // pred_fallthru
      _
    // Predicated region
    $region6: #{tpu_custom_call.1} parent=1 // pred_check
      _
    $region7: #{tpu_custom_call.1} parent=1 // pred_check_branch
      %21 = sbr.rel (0) target = $region9
    $region8: #{tpu_custom_call.1} parent=1 // pred_region
      _
    $region9: #{tpu_custom_call.1} parent=1 // pred_fallthru
      _
    // Predicated region
    $region10: #{tpu_custom_call.1} parent=1 // pred_check
      _
    $region11: #{tpu_custom_call.1} parent=1 // pred_check_branch
      %23 = sbr.rel (0) target = $region13
    $region12: #{tpu_custom_call.1} parent=1 // pred_region
      _
    $region13: #{tpu_custom_call.1} parent=1 // pred_fallthru
      _
    // Predicated region
    $region14: #{tpu_custom_call.1} parent=1 // pred_check
      _
    $region15: #{tpu_custom_call.1} parent=1 // pred_check_branch
      %25 = sbr.rel (0) target = $region17
    $region16: #{tpu_custom_call.1} parent=1 // pred_region
      _
    $region17: #{tpu_custom_call.1} parent=1 // pred_fallthru
      _
    // Predicated region
    $region18: #{tpu_custom_call.1} parent=1 // pred_check
      _
    $region19: #{tpu_custom_call.1} parent=1 // pred_check_branch
      %27 = sbr.rel (0) target = $region21
    $region20: #{tpu_custom_call.1} parent=1 // pred_region
      _
    $region21: #{tpu_custom_call.1} parent=1 // pred_fallthru
      _
    // Predicated region
    $region22: #{tpu_custom_call.1} parent=1 // pred_check
      _
    $region23: #{tpu_custom_call.1} parent=1 // pred_check_branch
      %29 = sbr.rel (0) target = $region25
    $region24: #{tpu_custom_call.1} parent=1 // pred_region
      _
    $region25: #{tpu_custom_call.1} parent=1 // pred_fallthru
      _
    // Predicated region
    $region26: #{tpu_custom_call.1} parent=1 // pred_check
      _
    $region27: #{tpu_custom_call.1} parent=1 // pred_check_branch
      %31 = sbr.rel (0) target = $region29
    $region28: #{tpu_custom_call.1} parent=1 // pred_region
      _
    $region29: #{tpu_custom_call.1} parent=1 // pred_fallthru
      _
    // Predicated region
    $region30: #{tpu_custom_call.1} parent=1 // pred_check
      _
    $region31: #{tpu_custom_call.1} parent=1 // pred_check_branch
      %33 = sbr.rel (0) target = $region33
    $region32: #{tpu_custom_call.1} parent=1 // pred_region
      _
    $region33: #{tpu_custom_call.1} parent=1 // pred_fallthru
      _
    // Predicated region
    $region34: #{tpu_custom_call.1} parent=1 // pred_check
      _
    $region35: #{tpu_custom_call.1} parent=1 // pred_check_branch
      %35 = sbr.rel (0) target = $region37
    $region36: #{tpu_custom_call.1} parent=1 // pred_region
      _
    $region37: #{tpu_custom_call.1} parent=1 // pred_fallthru
      _
    // Predicated region
    $region38: #{tpu_custom_call.1} parent=1 // pred_check
      _
    $region39: #{tpu_custom_call.1} parent=1 // pred_check_branch
      %37 = sbr.rel (0) target = $region41
    $region40: #{tpu_custom_call.1} parent=1 // pred_region
      _
    $region41: #{tpu_custom_call.1} parent=1 // pred_fallthru
      _
    // Predicated region
    $region42: #{tpu_custom_call.1} parent=1 // pred_check
      _
    $region43: #{tpu_custom_call.1} parent=1 // pred_check_branch
      %39 = sbr.rel (0) target = $region45
    $region44: #{tpu_custom_call.1} parent=1 // pred_region
      _
    $region45: #{tpu_custom_call.1} parent=1 // pred_fallthru
      _
    // Predicated region
    $region46: #{tpu_custom_call.1} parent=1 // pred_check
      _
    $region47: #{tpu_custom_call.1} parent=1 // pred_check_branch
      %41 = sbr.rel (0) target = $region49
    $region48: #{tpu_custom_call.1} parent=1 // pred_region
      _
    $region49: #{tpu_custom_call.1} parent=1 // pred_fallthru
      _
    %v43 = vld [vmem:[%s0] sm:$0xff]
    %v44 = vld [vmem:[%s0 + $0x8] sm:$0xff]
    %v45 = vld [vmem:[%s0 + $0x10] sm:$0xff]
    %v46 = vld [vmem:[%s0 + $0x18] sm:$0xff]
    %v47 = vld [vmem:[%s0 + $0x20] sm:$0xff]
    %v48 = vld [vmem:[%s0 + $0x28] sm:$0xff]
    %v49 = vld [vmem:[%s0 + $0x30] sm:$0xff]
    %v50 = vld [vmem:[%s0 + $0x38] sm:$0xff]
    %v51 = vld [vmem:[%s1] sm:$0x1]
    %v52 = vld [vmem:[%s2] sm:$0xf]
    %v53 = vld [vmem:[%s2 + $0x4] sm:$0xf]
    %v54 = vld [vmem:[%s2 + $0x8] sm:$0xf]
    %v55 = vld [vmem:[%s2 + $0xc] sm:$0xf]
    %v56 = vld [vmem:[%s2 + $0x10] sm:$0xf]
    %v57 = vld [vmem:[%s2 + $0x14] sm:$0xf]
    %v58 = vld [vmem:[%s2 + $0x18] sm:$0xf]
    %v59 = vld [vmem:[%s2 + $0x1c] sm:$0xf]
    %v60 = vld [vmem:[%s3] sm:$0xff]
    %v61 = vld [vmem:[%s3 + $0x8] sm:$0xff]
    %v62 = vld [vmem:[%s4] sm:$0xff]
    %v63 = vld [vmem:[%s4 + $0x8] sm:$0xff]
    %v64 = vld [vmem:[%s4 + $0x10] sm:$0xff]
    %v65 = vld [vmem:[%s4 + $0x18] sm:$0xff]
    %v66 = vld [vmem:[%s4 + $0x20] sm:$0xff]
    %v67 = vld [vmem:[%s4 + $0x28] sm:$0xff]
    %v68 = vld [vmem:[%s4 + $0x30] sm:$0xff]
    %v69 = vld [vmem:[%s4 + $0x38] sm:$0xff]
    %v70 = vld [vmem:[%s5] sm:$0x1]
    %v71 = vlaneseq
    %v72 = vand.u32 %v71, 127
    %73 = vset.pattern.permute.xlu0 0
    %74 = vperm.xlu0 %73, %v62
    %v75 = vpop.permute.xlu0 %74
    %76 = vset.pattern.permute.xlu0 0
    %77 = vperm.xlu0 %76, %v63
    %v78 = vpop.permute.xlu0 %77
    %79 = vset.pattern.permute.xlu0 0
    %80 = vperm.xlu0 %79, %v64
    %v81 = vpop.permute.xlu0 %80
    %82 = vset.pattern.permute.xlu0 0
    %83 = vperm.xlu0 %82, %v65
    %v84 = vpop.permute.xlu0 %83
    %85 = vset.pattern.permute.xlu0 0
    %86 = vperm.xlu0 %85, %v66
    %v87 = vpop.permute.xlu0 %86
    %88 = vset.pattern.permute.xlu0 0
    %89 = vperm.xlu0 %88, %v67
    %v90 = vpop.permute.xlu0 %89
    %91 = vset.pattern.permute.xlu0 0
    %92 = vperm.xlu0 %91, %v68
    %v93 = vpop.permute.xlu0 %92
    %94 = vset.pattern.permute.xlu0 0
    %95 = vperm.xlu0 %94, %v69
    %v96 = vpop.permute.xlu0 %95
    %vm97 = vcmp.eq.s32.totalorder %v75, %v72
    %vm98 = vcmp.eq.s32.totalorder %v78, %v72
    %vm99 = vcmp.eq.s32.totalorder %v81, %v72
    %vm100 = vcmp.eq.s32.totalorder %v84, %v72
    %vm101 = vcmp.eq.s32.totalorder %v87, %v72
    %vm102 = vcmp.eq.s32.totalorder %v90, %v72
    %vm103 = vcmp.eq.s32.totalorder %v93, %v72
    %vm104 = vcmp.eq.s32.totalorder %v96, %v72
    %v105 = vsel %vm97, 1, 0
    %v106 = vsel %vm98, 1, 0
    %v107 = vsel %vm99, 1, 0
    %v108 = vsel %vm100, 1, 0
    %v109 = vsel %vm101, 1, 0
    %v110 = vsel %vm102, 1, 0
    %v111 = vsel %vm103, 1, 0
    %v112 = vsel %vm104, 1, 0
    %v113 = vcvt.s32.f32 %v105
    %v114 = vcvt.s32.f32 %v106
    %v115 = vcvt.s32.f32 %v107
    %v116 = vcvt.s32.f32 %v108
    %v117 = vcvt.s32.f32 %v109
    %v118 = vcvt.s32.f32 %v110
    %v119 = vcvt.s32.f32 %v111
    %v120 = vcvt.s32.f32 %v112
    %v121 = vpack.c.bf16 %v114, %v113
    %v122 = vpack.c.bf16 %v116, %v115
    %v123 = vpack.c.bf16 %v118, %v117
    %v124 = vpack.c.bf16 %v120, %v119
    %v125 = vlaneseq
    %v126 = vshrl.u32 %v125, 7
    %v127 = vadd.s32 %v126, 8
    %v128 = vperm.slane %v70, 0
    %vm129 = vcmp.eq.s32.totalorder %v126, %v128
    %vm130 = vcmp.eq.s32.totalorder %v127, %v128
    %v131 = vsel %vm129, 1, 0
    %v132 = vsel %vm130, 1, 0
    %v133 = vcvt.s32.f32 %v131
    %v134 = vcvt.s32.f32 %v132
    %v135 = vpack.c.bf16 %v134, %v133
    %v137 = vperm.slane %v51, 0
    %v139 = vsel %vm129, %v137, -1e+30
    %v140 = vsel %vm130, %v137, -1e+30
    %vm141 = vcmask 523264
    %v142 = vsel %vm141, %v139, -inf
    %143 = vmax.xlane.f32.xlu0 %v142
    %v144 = vpop.xlane.xlu0 %143
    %v145 = vsel %vm141, %v140, -inf
    %146 = vmax.xlane.f32.xlu0 %v145
    %v147 = vpop.xlane.xlu0 %146
    %v148 = vpack.c.bf16 %v147, %v144
    %vm149 = vcmask 130048
    %v151 = vsel %vm149, %v121, 0
    %v154 = vsel %vm149, %v122, 0
    %v157 = vsel %vm149, %v123, 0
    %v160 = vsel %vm149, %v124, 0
    %162 = vmatpush.bf16.msra.mxu0 0
    %163 = vmatpush.bf16.msra.mxu0 0
    %164 = vmatpush.bf16.msra.mxu0 0
    %165 = vmatpush.bf16.msra.mxu0 0
    %166 = vmatpush.bf16.msra.mxu0 0
    %167 = vmatpush.bf16.msra.mxu0 0
    %168 = vmatpush.bf16.msra.mxu0 0
    %169 = vmatpush.bf16.msra.mxu0 %v148
    %170 = vmatmul.bf16.gmra.mxu0 %v151
    %v171 = vpop.f32.mrf.mxu0
    %v172 = vadd.f32 0.0, %v171
    %v173 = vpop.f32.mrf.mxu0
    %v174 = vadd.f32 0.0, %v173
    %175 = vmatmul.bf16.gmra.mxu0 %v154
    %v176 = vpop.f32.mrf.mxu0
    %v177 = vadd.f32 0.0, %v176
    %v178 = vpop.f32.mrf.mxu0
    %v179 = vadd.f32 0.0, %v178
    %180 = vmatmul.bf16.gmra.mxu0 %v157
    %v181 = vpop.f32.mrf.mxu0
    %v182 = vadd.f32 0.0, %v181
    %v183 = vpop.f32.mrf.mxu0
    %v184 = vadd.f32 0.0, %v183
    %185 = vmatmul.bf16.gmra.mxu0 %v160
    %v186 = vpop.f32.mrf.mxu0
    %v187 = vadd.f32 0.0, %v186
    %v188 = vpop.f32.mrf.mxu0
    %v189 = vadd.f32 0.0, %v188
    %190 = vdwg.mxu0
    %v191 = vsub.f32 %v43, %v172
    %v192 = vsub.f32 %v44, %v174
    %v193 = vsub.f32 %v45, %v177
    %v194 = vsub.f32 %v46, %v179
    %v195 = vsub.f32 %v47, %v182
    %v196 = vsub.f32 %v48, %v184
    %v197 = vsub.f32 %v49, %v187
    %v198 = vsub.f32 %v50, %v189
    %v199 = vmul.f32 %v191, 1.442695
    %v200 = vpow.pop %v199
    %v201 = vmul.f32 %v192, 1.442695
    %v202 = vpow.pop %v201
    %v203 = vmul.f32 %v193, 1.442695
    %v204 = vpow.pop %v203
    %v205 = vmul.f32 %v194, 1.442695
    %v206 = vpow.pop %v205
    %v207 = vmul.f32 %v195, 1.442695
    %v208 = vpow.pop %v207
    %v209 = vmul.f32 %v196, 1.442695
    %v210 = vpow.pop %v209
    %v211 = vmul.f32 %v197, 1.442695
    %v212 = vpow.pop %v211
    %v213 = vmul.f32 %v198, 1.442695
    %v214 = vpow.pop %v213
    %v215 = vunpack.c.l.bf16 %v52
    %v216 = vunpack.c.l.bf16 %v53
    %v217 = vunpack.c.l.bf16 %v54
    %v218 = vunpack.c.l.bf16 %v55
    %v219 = vunpack.c.l.bf16 %v56
    %v220 = vunpack.c.l.bf16 %v57
    %v221 = vunpack.c.l.bf16 %v58
    %v222 = vunpack.c.l.bf16 %v59
    %224 = vset.pattern.permute.xlu0 0
    %225 = vperm.xlu0 %224, %v200
    %v226 = vpop.permute.xlu0 %225
    %229 = vset.pattern.permute.xlu0 0
    %230 = vperm.xlu0 %229, %v202
    %v231 = vpop.permute.xlu0 %230
    %234 = vset.pattern.permute.xlu0 0
    %235 = vperm.xlu0 %234, %v204
    %v236 = vpop.permute.xlu0 %235
    %239 = vset.pattern.permute.xlu0 0
    %240 = vperm.xlu0 %239, %v206
    %v241 = vpop.permute.xlu0 %240
    %244 = vset.pattern.permute.xlu0 0
    %245 = vperm.xlu0 %244, %v208
    %v246 = vpop.permute.xlu0 %245
    %249 = vset.pattern.permute.xlu0 0
    %250 = vperm.xlu0 %249, %v210
    %v251 = vpop.permute.xlu0 %250
    %254 = vset.pattern.permute.xlu0 0
    %255 = vperm.xlu0 %254, %v212
    %v256 = vpop.permute.xlu0 %255
    %259 = vset.pattern.permute.xlu0 0
    %260 = vperm.xlu0 %259, %v214
    %v261 = vpop.permute.xlu0 %260
    %v263 = vmul.f32 %v226, %v215
    %v264 = vmul.f32 %v231, %v216
    %v265 = vmul.f32 %v236, %v217
    %v266 = vmul.f32 %v241, %v218
    %v267 = vmul.f32 %v246, %v219
    %v268 = vmul.f32 %v251, %v220
    %v269 = vmul.f32 %v256, %v221
    %v270 = vmul.f32 %v261, %v222
    %v271 = vpack.c.bf16 %v264, %v263
    %v272 = vpack.c.bf16 %v266, %v265
    %v273 = vpack.c.bf16 %v268, %v267
    %v274 = vpack.c.bf16 %v270, %v269
    %v276 = vsel %vm141, %v135, 0
    %278 = vmatpush.bf16.msra.mxu0 0
    %279 = vmatpush.bf16.msra.mxu0 0
    %280 = vmatpush.bf16.msra.mxu0 0
    %281 = vmatpush.bf16.msra.mxu0 0
    %282 = vmatpush.bf16.msra.mxu0 %v274
    %283 = vmatpush.bf16.msra.mxu0 %v273
    %284 = vmatpush.bf16.msra.mxu0 %v272
    %285 = vmatpush.bf16.msra.mxu0 %v271
    %286 = vmatmul.bf16.gmra.mxu0 %v276
    %v287 = vpop.f32.mrf.mxu0
    %v288 = vadd.f32 0.0, %v287
    %v289 = vpop.f32.mrf.mxu0
    %v290 = vadd.f32 0.0, %v289
    %291 = vdwg.mxu0
    %vm292 = vcmp.gt.f32.partialorder %v288, 0.0
    %vm293 = vcmp.gt.f32.partialorder %v290, 0.0
    %v294 = vrcp.pop %v288
    %v295 = vrcp.pop %v290
    %v296 = vsel %vm292, %v294, 0.0
    %v297 = vsel %vm293, %v295, 0.0
    %299 = vset.pattern.permute.xlu0 8
    %300 = vperm.xlu0 %299, %v296
    %v301 = vpop.permute.xlu0 %300
    %304 = vset.pattern.permute.xlu0 8
    %305 = vperm.xlu0 %304, %v297
    %v306 = vpop.permute.xlu0 %305
    %v308 = vmul.f32 %v288, %v301
    %v309 = vmul.f32 %v290, %v306
    %v310 = vpack.c.bf16 %v309, %v308
    %v311 = vld [vmem:[%s6] sm:$0xf]
    %v312 = vmul.f32 %v288, %v296
    %v313 = vmul.f32 %v290, %v297
    %v314 = vld [vmem:[%s7] sm:$0x1]
    %316 = vset.pattern.permute.xlu0 8
    %317 = vperm.xlu0 %316, %v312
    %v318 = vpop.permute.xlu0 %317
    %321 = vset.pattern.permute.xlu0 8
    %322 = vperm.xlu0 %321, %v313
    %v323 = vpop.permute.xlu0 %322
    %v326 = vperm.slane %v314, 0
    %v328 = vmul.f32 %v318, %v326
    %v329 = vmul.f32 %v323, %v326
    %vm330 = vcmask 64512
    %v332 = vsel %vm330, %v310, 0
    %vm334 = vcmask 1043456
    %v336 = vsel %vm334, %v311, 0
    %338 = vmatpush.bf16.msra.mxu0 0
    %339 = vmatpush.bf16.msra.mxu0 0
    %340 = vmatpush.bf16.msra.mxu0 0
    %341 = vmatpush.bf16.msra.mxu0 0
    %342 = vmatpush.bf16.msra.mxu0 0
    %343 = vmatpush.bf16.msra.mxu0 0
    %344 = vmatpush.bf16.msra.mxu0 0
    %345 = vmatpush.bf16.msra.mxu0 %v336
    %346 = vmatmul.bf16.gmra.mxu0 %v332
    %v347 = vpop.f32.mrf.mxu0
    %v348 = vadd.f32 %v328, %v347
    %v349 = vpop.f32.mrf.mxu0
    %v350 = vadd.f32 %v329, %v349
    %351 = vdwg.mxu0
    %vm352 = vcmp.gt.f32.partialorder %v348, 0.0
    %vm353 = vcmp.gt.f32.partialorder %v350, 0.0
    %v354 = vmul.f32 %v348, 1.442695
    %v355 = vpow.pop %v354
    %v356 = vmul.f32 %v350, 1.442695
    %v357 = vpow.pop %v356
    %v358 = vsub.f32 %v355, 1.0
    %v359 = vsub.f32 %v357, 1.0
    %v360 = vsel %vm352, %v348, %v358
    %v361 = vsel %vm353, %v350, %v359
    %v362 = vpack.c.bf16 %v361, %v360
    %v363 = vld [vmem:[%s8] sm:$0xf]
    %v364 = vld [vmem:[%s8 + $0x4] sm:$0xf]
    %v365 = vld [vmem:[%s8 + $0x8] sm:$0xf]
    %v366 = vld [vmem:[%s8 + $0xc] sm:$0xf]
    %v367 = vld [vmem:[%s9] sm:$0x1]
    %v369 = vperm.slane %v367, 0
    %v375 = vunpack.c.l.b16 %v363
    %v376 = vunpack.c.l.b16 %v364
    %v377 = vunpack.c.l.b16 %v365
    %v378 = vunpack.c.l.b16 %v366
    %v379 = vpack.c.b16 %v376, %v375
    %v380 = vpack.c.b16 %v378, %v377
    %vm383 = vcmask 261120
    %v385 = vsel %vm383, %v362, 0
    %387 = vmatpush.bf16.msra.mxu0 0
    %388 = vmatpush.bf16.msra.mxu0 0
    %389 = vmatpush.bf16.msra.mxu0 0
    %390 = vmatpush.bf16.msra.mxu0 0
    %391 = vmatpush.bf16.msra.mxu0 0
    %392 = vmatpush.bf16.msra.mxu0 0
    %393 = vmatpush.bf16.msra.mxu0 %v380
    %394 = vmatpush.bf16.msra.mxu0 %v379
    %395 = vmatmul.bf16.gmra.mxu0 %v385
    %v396 = vpop.f32.mrf.mxu0
    %v397 = vadd.f32 %v369, %v396
    %v398 = vpop.f32.mrf.mxu0
    %v399 = vadd.f32 %v369, %v398
    %400 = vdwg.mxu0
    %v401 = vpack.c.bf16 %v61, %v60
    %v402 = vld [vmem:[%s10] sm:$0xf]
    %v403 = vld [vmem:[%s10 + $0x4] sm:$0xf]
    %v404 = vld [vmem:[%s10 + $0x8] sm:$0xf]
    %v405 = vld [vmem:[%s10 + $0xc] sm:$0xf]
    %v406 = vld [vmem:[%s11] sm:$0x1]
    %v408 = vperm.slane %v406, 0
    %v414 = vunpack.c.l.b16 %v402
    %v415 = vunpack.c.l.b16 %v403
    %v416 = vunpack.c.l.b16 %v404
    %v417 = vunpack.c.l.b16 %v405
    %v418 = vpack.c.b16 %v415, %v414
    %v419 = vpack.c.b16 %v417, %v416
    %v423 = vsel %vm383, %v401, 0
    %425 = vmatpush.bf16.msra.mxu0 0
    %426 = vmatpush.bf16.msra.mxu0 0
    %427 = vmatpush.bf16.msra.mxu0 0
    %428 = vmatpush.bf16.msra.mxu0 0
    %429 = vmatpush.bf16.msra.mxu0 0
    %430 = vmatpush.bf16.msra.mxu0 0
    %431 = vmatpush.bf16.msra.mxu0 %v419
    %432 = vmatpush.bf16.msra.mxu0 %v418
    %433 = vmatmul.bf16.gmra.mxu0 %v423
    %v434 = vpop.f32.mrf.mxu0
    %v435 = vadd.f32 %v408, %v434
    %v436 = vpop.f32.mrf.mxu0
    %v437 = vadd.f32 %v408, %v436
    %438 = vdwg.mxu0
    %v439 = vadd.f32 %v397, %v435
    %v440 = vadd.f32 %v399, %v437
    %v441 = vmul.f32 %v439, 0.5
    %v442 = vmul.f32 %v440, 0.5
    %v443 = vtanh.pop %v441
    %v444 = vtanh.pop %v442
    %v445 = vmul.f32 %v443, 0.5
    %v446 = vmul.f32 %v444, 0.5
    %v447 = vadd.f32 %v445, 0.5
    %v448 = vadd.f32 %v446, 0.5
    %451 = vrot.lane.b32.xlu0 %v435, 64
    %v452 = vpop.permute.xlu0 %451
    %453 = vrot.lane.b32.xlu0 %v437, 64
    %v454 = vpop.permute.xlu0 %453
    %v457 = vmul.f32 %v447, %v452
    %v458 = vmul.f32 %v448, %v454
    %461 = vrot.lane.b32.xlu0 %v457, 64
    %v462 = vpop.permute.xlu0 %461
    %463 = vrot.lane.b32.xlu0 %v458, 64
    %v464 = vpop.permute.xlu0 %463
    %v467 = vadd.f32 %v397, %v462
    %v468 = vadd.f32 %v399, %v464
    %v469 = vtanh.pop %v467
    %v470 = vtanh.pop %v468
    %v471 = vsub.f32 1.0, %v447
    %v472 = vsub.f32 1.0, %v448
    %475 = vrot.lane.b32.xlu0 %v469, 96
    %v476 = vpop.permute.xlu0 %475
    %477 = vrot.lane.b32.xlu0 %v470, 96
    %v478 = vpop.permute.xlu0 %477
    %v481 = vmul.f32 %v471, %v476
    %v482 = vmul.f32 %v472, %v478
    %485 = vrot.lane.b32.xlu0 %v60, 32
    %v486 = vpop.permute.xlu0 %485
    %487 = vrot.lane.b32.xlu0 %v61, 32
    %v488 = vpop.permute.xlu0 %487
    %v491 = vmul.f32 %v447, %v486
    %v492 = vmul.f32 %v448, %v488
    %v493 = vadd.f32 %v481, %v491
    %v494 = vadd.f32 %v482, %v492
    %v495 = vmax.f32 %v493, 0.0
    %v496 = vmax.f32 %v494, 0.0
    %499 = vrot.lane.b32.xlu0 %v495, 96
    %v500 = vpop.permute.xlu0 %499
    %501 = vrot.lane.b32.xlu0 %v496, 96
    %v502 = vpop.permute.xlu0 %501
    %505 = vst.msk [vmem:[#allocation2] sm:$0xff] %vm383, %v500
    %506 = vst.msk [vmem:[#allocation2 + $0x8] sm:$0xff] %vm383, %v502
    // Predicated region
    $region50: #{tpu_custom_call.1} parent=1 // pred_check
      _
    $region51: #{tpu_custom_call.1} parent=1 // pred_check_branch
      %508 = sbr.rel (0) target = $region53
    $region52: #{tpu_custom_call.1} parent=1 // pred_region
      %510 = vsyncadd [#allocation3], 0
      %s511 = sshll.u32 [#allocation2], 4
      %s512 = int_to_ptr.vmem [resolvable:$true] %s511
      %s513 = sshll.u32 %s12, 4
      %s514 = int_to_ptr.hbm [resolvable:$true] %s513
      %519 = dma.vmem_to_hbm [thread:$0]  %s512, 256, %s514, [#allocation3], 128, 128, 8
    $region53: #{tpu_custom_call.1} parent=1 // pred_fallthru
      _
    // Predicated region
    $region54: #{tpu_custom_call.1} parent=1 // pred_check
      _
    $region55: #{tpu_custom_call.1} parent=1 // pred_check_branch
      %521 = sbr.rel (0) target = $region57
    $region56: #{tpu_custom_call.1} parent=1 // pred_region
      %523 = dma.done [#allocation3], 256
    $region57: #{tpu_custom_call.1} parent=1 // pred_fallthru
      _
    %524 = vsyncpa [#allocation3], 1

</llo_original>
